<compile_context>
chip_gen: v6e
topology: v6e:2x2x1
jax: 0.10.0
libtpu: 0.0.40
codegen_flags: <defaults>
</compile_context>

<pallas_src>
from functools import lru_cache

import numpy as np

import jax
import jax.numpy as jnp
from jax.experimental import pallas as pl
from jax.experimental.pallas import tpu as pltpu


# --------------------------------------------------------------------------- #
# Kernel
# --------------------------------------------------------------------------- #
def _afdf_kernel(x_ref, e_ref, o_ref):
    # x_ref : (tb, W) f32   W = r*2C lanes; r batch rows packed per row
    # e_ref : (W, W)  bf16  block-diagonal residual kron(I_r, M - I), resident
    # o_ref : (tb, W) f32
    x = x_ref[...]
    # Identity part carried exactly in f32; only the small residual goes
    # through the single-pass bf16 MXU matmul (f32 accumulate).
    y = x + jnp.dot(x.astype(jnp.bfloat16), e_ref[...],
                    preferred_element_type=jnp.float32)
    o_ref[...] = y.astype(o_ref.dtype)


# --------------------------------------------------------------------------- #
# Host-side constants (cached per channel count; perf review #8)
# --------------------------------------------------------------------------- #
@lru_cache(maxsize=None)
def _dft_matrices_np(c):
    """Real (2C, 2C) forward-DFT and normalized inverse-DFT matrices acting on
    row vectors in interleaved (re, im) layout.  Built once per C on the host
    in float64 (also avoids the int32 overflow flagged for very large C)."""
    n = np.arange(c, dtype=np.int64)
    ang = (2.0 * np.pi / c) * (np.outer(n, n) % c).astype(np.float64)
    cm, sm = np.cos(ang), np.sin(ang)

    # f[2k] = sum_n ur[n]*cos + ui[n]*sin ;  f[2k+1] = sum_n ui[n]*cos - ur[n]*sin
    mf = np.empty((2 * c, 2 * c), np.float64)
    mf[0::2, 0::2] = cm
    mf[1::2, 0::2] = sm
    mf[0::2, 1::2] = -sm
    mf[1::2, 1::2] = cm

    # y[2n] = (1/C) sum_k gr*cos - gi*sin ;  y[2n+1] = (1/C) sum_k gr*sin + gi*cos
    mi = np.empty((2 * c, 2 * c), np.float64)
    mi[0::2, 0::2] = cm
    mi[1::2, 0::2] = -sm
    mi[0::2, 1::2] = sm
    mi[1::2, 1::2] = cm
    mi /= c
    return mf.astype(np.float32), mi.astype(np.float32)


# --------------------------------------------------------------------------- #
# Spec helpers
# --------------------------------------------------------------------------- #
def _const_block_spec(shape):
    """Grid-invariant (resident) operand: constant index_map; single-buffered
    when supported so the (W, W) constant is not double-buffered in VMEM
    (matters most on v7x's 64 MiB VMEM at large C; perf review #5)."""
    index_map = lambda i: (0,) * len(shape)
    try:
        return pl.BlockSpec(shape, index_map, pipeline_mode=pl.Buffered(1))
    except (AttributeError, TypeError):   # older JAX without pipeline_mode
        return pl.BlockSpec(shape, index_map)


def _choose_batch_tile(bp, target):
    """Largest multiple-of-8 divisor of bp that is <= target; prefers >= 2 grid
    steps so the 'parallel' axis can shard across v7x's two TensorCores
    (perf review #4).  Falls back to one full-extent block (always legal)."""
    if bp <= target:
        if bp >= 32 and bp % 16 == 0:
            return bp // 2            # exactly 2 steps, still a multiple of 8
        return bp                     # single full-extent block
    t = (target // 8) * 8
    while t >= 8:
        if bp % t == 0:
            return t
        t -= 8
    # No aligned divisor (e.g. odd bp): one big block.  Correct, but may need
    # more VMEM than the tiled path; not hit for typical batch sizes.
    return bp


# --------------------------------------------------------------------------- #
# Forward wrapper
# --------------------------------------------------------------------------- #
def afdf_forward(x, a, d, *, batch_tile=512, lane_target=256):
    """
    x : (B, C, 2)  real/imag interleaved on the last axis (PyTorch old-fft layout)
    a : (1, C, 2)  parameter A
    d : (1, C, 2)  parameter D
    returns (B, C, 2) = ifft(D * fft(A * x, 1), 1)
    """
    b, c, two = x.shape
    assert two == 2 and a.shape[-2:] == (c, 2) and d.shape[-2:] == (c, 2)
    tc = 2 * c

    # ---- Fold A, FFT, D, IFFT into one (2C, 2C) matrix (perf review #1). ----
    mf, mi = _dft_matrices_np(c)                       # host-cached per C
    a2 = a.reshape(tc).astype(jnp.float32)
    d2 = d.reshape(tc).astype(jnp.float32)
    # One tiny (2C)^3 matmul per parameter value, OUTSIDE the hot loop, so use
    # HIGHEST precision here: the fused matrix must be f32-accurate.
    m = jnp.dot(a2[:, None] * mf, d2[:, None] * mi,
                precision=jax.lax.Precision.HIGHEST)
    e = m - jnp.eye(tc, dtype=jnp.float32)             # residual around identity

    # ---- Lane packing for small 2C (perf review #3): free reshapes only. ----
    r = 1
    while 2 * r * tc <= lane_target and b % (2 * r) == 0:
        r *= 2
    w = r * tc
    if r > 1:
        e = jnp.kron(jnp.eye(r, dtype=jnp.float32), e)  # block-diagonal residual
    e = e.astype(jnp.bfloat16)                          # half the resident bytes

    bp = b // r
    x2 = x.reshape(bp, w).astype(jnp.float32)

    # ---- Batch tiling (grid over packed batch rows only). ----
    tb = _choose_batch_tile(bp, batch_tile)
    grid = (bp // tb,)

    # ---- Explicit VMEM budget, v7x-safe 64 MiB cap (perf review #6). ----
    vmem_need = (2 * 2 * tb * w * 4      # x in + y out blocks, double-buffered f32
                 + w * w * 2             # resident bf16 residual matrix
                 + 2 * tb * w * 4)       # in-kernel intermediates headroom
    vmem_limit = int(min(max(2 * vmem_need, 32 * 2 ** 20), 64 * 2 ** 20))

    cost = pl.CostEstimate(              # perf review #9
        flops=2 * bp * w * w,
        transcendentals=0,
        bytes_accessed=2 * bp * w * 4 + w * w * 2)

    out2 = pl.pallas_call(
        _afdf_kernel,
        out_shape=jax.ShapeDtypeStruct((bp, w), jnp.float32),
        grid_spec=pltpu.PrefetchScalarGridSpec(
            num_scalar_prefetch=0,
            grid=grid,
            in_specs=[
                pl.BlockSpec((tb, w), lambda i: (i, 0)),   # x tile (moves with grid)
                _const_block_spec((w, w)),                 # resident residual matrix
            ],
            out_specs=pl.BlockSpec((tb, w), lambda i: (i, 0)),
        ),
        compiler_params=pltpu.CompilerParams(
            dimension_semantics=("parallel",),
            vmem_limit_bytes=vmem_limit,
        ),
        cost_estimate=cost,
    )(x2, e)

    return out2.reshape(b, c, 2)


# --------------------------------------------------------------------------- #
# Pure-JAX reference (mirrors the PyTorch module with real FFT primitives)
# --------------------------------------------------------------------------- #
def _reference(x, a, d):
    u = a * x
    uc = u[..., 0] + 1j * u[..., 1]
    fc = jnp.fft.fft(uc, axis=-1)            # signal dim = channel dim
    f = jnp.stack([fc.real, fc.imag], axis=-1)
    g = d * f
    gc = g[..., 0] + 1j * g[..., 1]
    yc = jnp.fft.ifft(gc, axis=-1)           # normalized inverse (1/C)
    return jnp.stack([yc.real, yc.imag], axis=-1)


if __name__ == "__main__":
    key = jax.random.PRNGKey(0)
    kx, ka, kd, kx2 = jax.random.split(key, 4)

    # Small shapes consistent with the module (in_channels == out_channels).
    batch, channels = 2, 32
    x = jax.random.normal(kx, (batch, channels, 2), dtype=jnp.float32)
    # Parameter init mirrors PyTorch: normal_(mean=1.0, std=0.01)
    a = 1.0 + 0.01 * jax.random.normal(ka, (1, channels, 2), dtype=jnp.float32)
    d = 1.0 + 0.01 * jax.random.normal(kd, (1, channels, 2), dtype=jnp.float32)

    fwd = jax.jit(afdf_forward)

    out = jax.block_until_ready(fwd(x, a, d))
    assert out.shape == (batch, channels, 2), out.shape
    ref = _reference(x, a, d)
    err = float(jnp.max(jnp.abs(out - ref)))
    assert jnp.allclose(out, ref, atol=1e-3, rtol=1e-3), f"max|err|={err}"

    # Also exercise the lane-packed (r=4) multi-step-grid path.
    xb = jax.random.normal(kx2, (256, channels, 2), dtype=jnp.float32)
    outb = jax.block_until_ready(fwd(xb, a, d))
    refb = _reference(xb, a, d)
    errb = float(jnp.max(jnp.abs(outb - refb)))
    assert jnp.allclose(outb, refb, atol=1e-3, rtol=1e-3), f"max|err|={errb}"

    print("KERNEL_OK")
</pallas_src>

<mosaic_0001>
module attributes {stable_mosaic.version = 11 : i64} {
  func.func @_afdf_kernel(%arg0: i32, %arg1: memref<1x128xf32, #tpu.memory_space<vmem>>, %arg2: memref<128x128xbf16, #tpu.memory_space<vmem>>, %arg3: memref<1x128xf32, #tpu.memory_space<vmem>>) attributes {dimension_semantics = [#tpu.dimension_semantics<parallel>], iteration_bounds = array<i64: 1>, scalar_prefetch = 0 : i64, scratch_operands = 0 : i64, tpu.core_type = #tpu.core_type<tc>, window_params = [{transform_indices = @transform_0, window_bounds = array<i64: 1, 128>}, {pipeline_mode = #tpu.pipeline_mode<synchronous>, transform_indices = @transform_1, window_bounds = array<i64: 128, 128>}, {transform_indices = @transform_2, window_bounds = array<i64: 1, 128>}]} {
    %c0 = arith.constant 0 : index
    %c0_0 = arith.constant 0 : index
    %0 = vector.load %arg1[%c0, %c0_0] : memref<1x128xf32, #tpu.memory_space<vmem>>, vector<1x128xf32>
    %1 = arith.truncf %0 : vector<1x128xf32> to vector<1x128xbf16>
    %c0_1 = arith.constant 0 : index
    %c0_2 = arith.constant 0 : index
    %2 = vector.load %arg2[%c0_1, %c0_2] : memref<128x128xbf16, #tpu.memory_space<vmem>>, vector<128x128xbf16>
    %cst = arith.constant dense<0.000000e+00> : vector<1x128xf32>
    %3 = tpu.matmul %1, %2, %cst {dimension_numbers = #tpu.dot_dimension_numbers<[1], [0], [0], [1], [0, 0, 1, 1], [], []>} : vector<1x128xbf16>, vector<128x128xbf16>, vector<1x128xf32> -> vector<1x128xf32>
    %4 = arith.addf %0, %3 : vector<1x128xf32>
    %c0_3 = arith.constant 0 : index
    %c0_4 = arith.constant 0 : index
    %5 = vector.load %arg3[%c0_3, %c0_4] : memref<1x128xf32, #tpu.memory_space<vmem>>, vector<1x128xf32>
    tpu.vector_store %arg3[%c0_3, %c0_4], %4 {strides = array<i32>} : memref<1x128xf32, #tpu.memory_space<vmem>>, vector<1x128xf32>,
    return
  }
  func.func @transform_0(%arg0: i32) -> (i32, i32) {
    %c0_i32 = arith.constant 0 : i32
    %c0_i32_0 = arith.constant 0 : i32
    return %arg0, %c0_i32 : i32, i32
  }
  func.func @transform_1(%arg0: i32) -> (i32, i32) {
    %c0_i32 = arith.constant 0 : i32
    %c0_i32_0 = arith.constant 0 : i32
    %c0_i32_1 = arith.constant 0 : i32
    return %c0_i32, %c0_i32_0 : i32, i32
  }
  func.func @transform_2(%arg0: i32) -> (i32, i32) {
    %c0_i32 = arith.constant 0 : i32
    %c0_i32_0 = arith.constant 0 : i32
    return %arg0, %c0_i32 : i32, i32
  }
}

</mosaic_0001>

<llo_original>
// kernel: mul.23
$region0: #{mul.23}
  %s0 = inlined_call_operand.vmem [shape: f32[1,32,2], index: 0, kind: input, shape index: {}]
  %s1 = inlined_call_operand.vmem [shape: f32[64], index: 1, kind: output, shape index: {}]
  $region1: #{mul.23} parent=0
    #allocation0 [shape = 'u8[4096]{0}', space=vmem, size = 0x1000, scoped, tag = 'scoped mem for output reshape']
    %v2 = vld [vmem:[%s0] sm:$0x1]
    %vm3 = vcmask 15360
    %4 = vst.msk [vmem:[#allocation0] sm:$0x1] %vm3, %v2
    %s5 = scalar_lea.vmem %s0, 31
    %v6 = vld [vmem:[%s5] sm:$0x1]
    %7 = vrot.lane.b32.xlu0 %v6, 62
    %v8 = vpop.permute.xlu0 %7
    %vm9 = vcmask 523760
    %10 = vst.msk [vmem:[#allocation0] sm:$0x1] %vm9, %v8
    %s11 = scalar_lea.vmem %s0, 30
    %v12 = vld [vmem:[%s11] sm:$0x1]
    %13 = vrot.lane.b32.xlu0 %v12, 60
    %v14 = vpop.permute.xlu0 %13
    %vm15 = vcmask 507360
    %16 = vst.msk [vmem:[#allocation0] sm:$0x1] %vm15, %v14
    %s17 = scalar_lea.vmem %s0, 29
    %v18 = vld [vmem:[%s17] sm:$0x1]
    %19 = vrot.lane.b32.xlu0 %v18, 58
    %v20 = vpop.permute.xlu0 %19
    %vm21 = vcmask 490960
    %22 = vst.msk [vmem:[#allocation0] sm:$0x1] %vm21, %v20
    %s23 = scalar_lea.vmem %s0, 28
    %v24 = vld [vmem:[%s23] sm:$0x1]
    %25 = vrot.lane.b32.xlu0 %v24, 56
    %v26 = vpop.permute.xlu0 %25
    %vm27 = vcmask 474560
    %28 = vst.msk [vmem:[#allocation0] sm:$0x1] %vm27, %v26
    %s29 = scalar_lea.vmem %s0, 27
    %v30 = vld [vmem:[%s29] sm:$0x1]
    %31 = vrot.lane.b32.xlu0 %v30, 54
    %v32 = vpop.permute.xlu0 %31
    %vm33 = vcmask 458160
    %34 = vst.msk [vmem:[#allocation0] sm:$0x1] %vm33, %v32
    %s35 = scalar_lea.vmem %s0, 26
    %v36 = vld [vmem:[%s35] sm:$0x1]
    %37 = vrot.lane.b32.xlu0 %v36, 52
    %v38 = vpop.permute.xlu0 %37
    %vm39 = vcmask 441760
    %40 = vst.msk [vmem:[#allocation0] sm:$0x1] %vm39, %v38
    %s41 = scalar_lea.vmem %s0, 25
    %v42 = vld [vmem:[%s41] sm:$0x1]
    %43 = vrot.lane.b32.xlu0 %v42, 50
    %v44 = vpop.permute.xlu0 %43
    %vm45 = vcmask 425360
    %46 = vst.msk [vmem:[#allocation0] sm:$0x1] %vm45, %v44
    %s47 = scalar_lea.vmem %s0, 24
    %v48 = vld [vmem:[%s47] sm:$0x1]
    %49 = vrot.lane.b32.xlu0 %v48, 48
    %v50 = vpop.permute.xlu0 %49
    %vm51 = vcmask 408960
    %52 = vst.msk [vmem:[#allocation0] sm:$0x1] %vm51, %v50
    %s53 = scalar_lea.vmem %s0, 23
    %v54 = vld [vmem:[%s53] sm:$0x1]
    %55 = vrot.lane.b32.xlu0 %v54, 46
    %v56 = vpop.permute.xlu0 %55
    %vm57 = vcmask 392560
    %58 = vst.msk [vmem:[#allocation0] sm:$0x1] %vm57, %v56
    %s59 = scalar_lea.vmem %s0, 22
    %v60 = vld [vmem:[%s59] sm:$0x1]
    %61 = vrot.lane.b32.xlu0 %v60, 44
    %v62 = vpop.permute.xlu0 %61
    %vm63 = vcmask 376160
    %64 = vst.msk [vmem:[#allocation0] sm:$0x1] %vm63, %v62
    %s65 = scalar_lea.vmem %s0, 21
    %v66 = vld [vmem:[%s65] sm:$0x1]
    %67 = vrot.lane.b32.xlu0 %v66, 42
    %v68 = vpop.permute.xlu0 %67
    %vm69 = vcmask 359760
    %70 = vst.msk [vmem:[#allocation0] sm:$0x1] %vm69, %v68
    %s71 = scalar_lea.vmem %s0, 20
    %v72 = vld [vmem:[%s71] sm:$0x1]
    %73 = vrot.lane.b32.xlu0 %v72, 40
    %v74 = vpop.permute.xlu0 %73
    %vm75 = vcmask 343360
    %76 = vst.msk [vmem:[#allocation0] sm:$0x1] %vm75, %v74
    %s77 = scalar_lea.vmem %s0, 19
    %v78 = vld [vmem:[%s77] sm:$0x1]
    %79 = vrot.lane.b32.xlu0 %v78, 38
    %v80 = vpop.permute.xlu0 %79
    %vm81 = vcmask 326960
    %82 = vst.msk [vmem:[#allocation0] sm:$0x1] %vm81, %v80
    %s83 = scalar_lea.vmem %s0, 18
    %v84 = vld [vmem:[%s83] sm:$0x1]
    %85 = vrot.lane.b32.xlu0 %v84, 36
    %v86 = vpop.permute.xlu0 %85
    %vm87 = vcmask 310560
    %88 = vst.msk [vmem:[#allocation0] sm:$0x1] %vm87, %v86
    %s89 = scalar_lea.vmem %s0, 17
    %v90 = vld [vmem:[%s89] sm:$0x1]
    %91 = vrot.lane.b32.xlu0 %v90, 34
    %v92 = vpop.permute.xlu0 %91
    %vm93 = vcmask 294160
    %94 = vst.msk [vmem:[#allocation0] sm:$0x1] %vm93, %v92
    %s95 = scalar_lea.vmem %s0, 16
    %v96 = vld [vmem:[%s95] sm:$0x1]
    %97 = vrot.lane.b32.xlu0 %v96, 32
    %v98 = vpop.permute.xlu0 %97
    %vm99 = vcmask 277760
    %100 = vst.msk [vmem:[#allocation0] sm:$0x1] %vm99, %v98
    %s101 = scalar_lea.vmem %s0, 15
    %v102 = vld [vmem:[%s101] sm:$0x1]
    %103 = vrot.lane.b32.xlu0 %v102, 30
    %v104 = vpop.permute.xlu0 %103
    %vm105 = vcmask 261360
    %106 = vst.msk [vmem:[#allocation0] sm:$0x1] %vm105, %v104
    %s107 = scalar_lea.vmem %s0, 14
    %v108 = vld [vmem:[%s107] sm:$0x1]
    %109 = vrot.lane.b32.xlu0 %v108, 28
    %v110 = vpop.permute.xlu0 %109
    %vm111 = vcmask 244960
    %112 = vst.msk [vmem:[#allocation0] sm:$0x1] %vm111, %v110
    %s113 = scalar_lea.vmem %s0, 13
    %v114 = vld [vmem:[%s113] sm:$0x1]
    %115 = vrot.lane.b32.xlu0 %v114, 26
    %v116 = vpop.permute.xlu0 %115
    %vm117 = vcmask 228560
    %118 = vst.msk [vmem:[#allocation0] sm:$0x1] %vm117, %v116
    %s119 = scalar_lea.vmem %s0, 12
    %v120 = vld [vmem:[%s119] sm:$0x1]
    %121 = vrot.lane.b32.xlu0 %v120, 24
    %v122 = vpop.permute.xlu0 %121
    %vm123 = vcmask 212160
    %124 = vst.msk [vmem:[#allocation0] sm:$0x1] %vm123, %v122
    %s125 = scalar_lea.vmem %s0, 11
    %v126 = vld [vmem:[%s125] sm:$0x1]
    %127 = vrot.lane.b32.xlu0 %v126, 22
    %v128 = vpop.permute.xlu0 %127
    %vm129 = vcmask 195760
    %130 = vst.msk [vmem:[#allocation0] sm:$0x1] %vm129, %v128
    %s131 = scalar_lea.vmem %s0, 10
    %v132 = vld [vmem:[%s131] sm:$0x1]
    %133 = vrot.lane.b32.xlu0 %v132, 20
    %v134 = vpop.permute.xlu0 %133
    %vm135 = vcmask 179360
    %136 = vst.msk [vmem:[#allocation0] sm:$0x1] %vm135, %v134
    %s137 = scalar_lea.vmem %s0, 9
    %v138 = vld [vmem:[%s137] sm:$0x1]
    %139 = vrot.lane.b32.xlu0 %v138, 18
    %v140 = vpop.permute.xlu0 %139
    %vm141 = vcmask 162960
    %142 = vst.msk [vmem:[#allocation0] sm:$0x1] %vm141, %v140
    %s143 = scalar_lea.vmem %s0, 8
    %v144 = vld [vmem:[%s143] sm:$0x1]
    %145 = vrot.lane.b32.xlu0 %v144, 16
    %v146 = vpop.permute.xlu0 %145
    %vm147 = vcmask 146560
    %148 = vst.msk [vmem:[#allocation0] sm:$0x1] %vm147, %v146
    %s149 = scalar_lea.vmem %s0, 7
    %v150 = vld [vmem:[%s149] sm:$0x1]
    %151 = vrot.lane.b32.xlu0 %v150, 14
    %v152 = vpop.permute.xlu0 %151
    %vm153 = vcmask 130160
    %154 = vst.msk [vmem:[#allocation0] sm:$0x1] %vm153, %v152
    %s155 = scalar_lea.vmem %s0, 6
    %v156 = vld [vmem:[%s155] sm:$0x1]
    %157 = vrot.lane.b32.xlu0 %v156, 12
    %v158 = vpop.permute.xlu0 %157
    %vm159 = vcmask 113760
    %160 = vst.msk [vmem:[#allocation0] sm:$0x1] %vm159, %v158
    %s161 = scalar_lea.vmem %s0, 5
    %v162 = vld [vmem:[%s161] sm:$0x1]
    %163 = vrot.lane.b32.xlu0 %v162, 10
    %v164 = vpop.permute.xlu0 %163
    %vm165 = vcmask 97360
    %166 = vst.msk [vmem:[#allocation0] sm:$0x1] %vm165, %v164
    %s167 = scalar_lea.vmem %s0, 4
    %v168 = vld [vmem:[%s167] sm:$0x1]
    %169 = vrot.lane.b32.xlu0 %v168, 8
    %v170 = vpop.permute.xlu0 %169
    %vm171 = vcmask 80960
    %172 = vst.msk [vmem:[#allocation0] sm:$0x1] %vm171, %v170
    %s173 = scalar_lea.vmem %s0, 3
    %v174 = vld [vmem:[%s173] sm:$0x1]
    %175 = vrot.lane.b32.xlu0 %v174, 6
    %v176 = vpop.permute.xlu0 %175
    %vm177 = vcmask 64560
    %178 = vst.msk [vmem:[#allocation0] sm:$0x1] %vm177, %v176
    %s179 = scalar_lea.vmem %s0, 2
    %v180 = vld [vmem:[%s179] sm:$0x1]
    %181 = vrot.lane.b32.xlu0 %v180, 4
    %v182 = vpop.permute.xlu0 %181
    %vm183 = vcmask 48160
    %184 = vst.msk [vmem:[#allocation0] sm:$0x1] %vm183, %v182
    %s185 = scalar_lea.vmem %s0, 1
    %v186 = vld [vmem:[%s185] sm:$0x1]
    %187 = vrot.lane.b32.xlu0 %v186, 2
    %v188 = vpop.permute.xlu0 %187
    %vm189 = vcmask 31760
    %190 = vst.msk [vmem:[#allocation0] sm:$0x1] %vm189, %v188
    %s192 = sshll.u32 1, 1
    %s193 = ssub.s32 %s192, 1
    %v195 = vld [vmem:[#allocation0] sm:%s193]
    %s196 = sshll.u32 1, 1
    %s197 = ssub.s32 %s196, 1
    %198 = vst [vmem:[%s1] sm:%s197] %v195

// kernel: afdf_forward.1
$region0: #{afdf_forward.1}
  #allocation0 [shape = 'u32[]', space=smem, size = 0x4, offset = 0x4, fixed_abs, tag = 'smem constant byte address 0x4 - core index']
  #allocation1 [shape = 'u32[144,128]{1,0:T(1,128)}', space=vmem, size = 0x12000, scoped, tag = 'internal scratch']
  %s0 = inlined_call_operand.vmem [shape: f32[1,128], index: 0, kind: input, shape index: {}]
  %s1 = inlined_call_operand.vmem [shape: bf16[128,128], index: 1, kind: input, shape index: {}]
  %s2 = inlined_call_operand.vmem [shape: f32[1,128], index: 2, kind: output, shape index: {}]
  %s3 = sld [smem:[#allocation0]]
  $region18: #{afdf_forward.1} parent=0
    _
  %s5 = ssub.s32 1, %s3
  %s6 = scalar_select 0, %s5, %s3
  // Predicated region
  $region2: #{afdf_forward.1} parent=0 // pred_check
    _
  $region3: #{afdf_forward.1} parent=0 // pred_check_branch
    %8 = sbr.rel (0) target = $region5
  $region4: #{afdf_forward.1} parent=0 // pred_region
    _
  $region5: #{afdf_forward.1} parent=0 // pred_fallthru
    _
  // Predicated region
  $region6: #{afdf_forward.1} parent=0 // pred_check
    _
  $region7: #{afdf_forward.1} parent=0 // pred_check_branch
    %10 = sbr.rel (0) target = $region9
  $region8: #{afdf_forward.1} parent=0 // pred_region
    _
  $region9: #{afdf_forward.1} parent=0 // pred_fallthru
    _
  %v12 = vld [vmem:[%s0] sm:$0x1]
  %v13 = vpack.c.bf16 %v12, %v12
  %v14 = vld [vmem:[%s1] sm:$0xf]
  %v15 = vld [vmem:[%s1 + $0x4] sm:$0xf]
  %v16 = vld [vmem:[%s1 + $0x8] sm:$0xf]
  %v17 = vld [vmem:[%s1 + $0xc] sm:$0xf]
  %v18 = vld [vmem:[%s1 + $0x10] sm:$0xf]
  %v19 = vld [vmem:[%s1 + $0x14] sm:$0xf]
  %v20 = vld [vmem:[%s1 + $0x18] sm:$0xf]
  %v21 = vld [vmem:[%s1 + $0x1c] sm:$0xf]
  %v22 = vld [vmem:[%s1 + $0x20] sm:$0xf]
  %v23 = vld [vmem:[%s1 + $0x24] sm:$0xf]
  %v24 = vld [vmem:[%s1 + $0x28] sm:$0xf]
  %v25 = vld [vmem:[%s1 + $0x2c] sm:$0xf]
  %v26 = vld [vmem:[%s1 + $0x30] sm:$0xf]
  %v27 = vld [vmem:[%s1 + $0x34] sm:$0xf]
  %v28 = vld [vmem:[%s1 + $0x38] sm:$0xf]
  %v29 = vld [vmem:[%s1 + $0x3c] sm:$0xf]
  %v46 = vunpack.c.l.b16 %v14
  %v47 = vunpack.c.l.b16 %v15
  %v48 = vunpack.c.l.b16 %v16
  %v49 = vunpack.c.l.b16 %v17
  %v50 = vunpack.c.l.b16 %v18
  %v51 = vunpack.c.l.b16 %v19
  %v52 = vunpack.c.l.b16 %v20
  %v53 = vunpack.c.l.b16 %v21
  %v54 = vunpack.c.l.b16 %v22
  %v55 = vunpack.c.l.b16 %v23
  %v56 = vunpack.c.l.b16 %v24
  %v57 = vunpack.c.l.b16 %v25
  %v58 = vunpack.c.l.b16 %v26
  %v59 = vunpack.c.l.b16 %v27
  %v60 = vunpack.c.l.b16 %v28
  %v61 = vunpack.c.l.b16 %v29
  %v62 = vpack.c.b16 %v47, %v46
  %v63 = vpack.c.b16 %v49, %v48
  %v64 = vpack.c.b16 %v51, %v50
  %v65 = vpack.c.b16 %v53, %v52
  %v66 = vpack.c.b16 %v55, %v54
  %v67 = vpack.c.b16 %v57, %v56
  %v68 = vpack.c.b16 %v59, %v58
  %v69 = vpack.c.b16 %v61, %v60
  %78 = vmatprep.subr.bf16.mxu0 0
  %79 = vmatpush1.bf16.msra.mxu0 %v69
  %80 = vmatprep.subr.bf16.mxu0 0
  %81 = vmatpush1.bf16.msra.mxu0 %v68
  %82 = vmatprep.subr.bf16.mxu0 0
  %83 = vmatpush1.bf16.msra.mxu0 %v67
  %84 = vmatprep.subr.bf16.mxu0 0
  %85 = vmatpush1.bf16.msra.mxu0 %v66
  %86 = vmatprep.subr.bf16.mxu0 0
  %87 = vmatpush1.bf16.msra.mxu0 %v65
  %88 = vmatprep.subr.bf16.mxu0 0
  %89 = vmatpush1.bf16.msra.mxu0 %v64
  %90 = vmatprep.subr.bf16.mxu0 0
  %91 = vmatpush1.bf16.msra.mxu0 %v63
  %92 = vmatprep.subr.bf16.mxu0 0
  %93 = vmatpush1.bf16.msra.mxu0 %v62
  %94 = vmatprep.subr.bf16.mxu0 0
  %95 = vmatpush2.bf16.msra.mxu0 0
  %96 = vmatprep.subr.bf16.mxu0 0
  %97 = vmatpush2.bf16.msra.mxu0 0
  %98 = vmatprep.subr.bf16.mxu0 0
  %99 = vmatpush2.bf16.msra.mxu0 0
  %100 = vmatprep.subr.bf16.mxu0 0
  %101 = vmatpush2.bf16.msra.mxu0 0
  %102 = vmatprep.subr.bf16.mxu0 0
  %103 = vmatpush2.bf16.msra.mxu0 0
  %104 = vmatprep.subr.bf16.mxu0 0
  %105 = vmatpush2.bf16.msra.mxu0 0
  %106 = vmatprep.subr.bf16.mxu0 0
  %107 = vmatpush2.bf16.msra.mxu0 0
  %108 = vmatprep.subr.bf16.mxu0 0
  %109 = vmatpush2.bf16.msra.mxu0 0
  %110 = vmatprep.mubr.bf16.mxu0 0
  %111 = vmatmul.mubr.bf16.gmra.mxu0 %v13
  %v112 = vpop.f32.mrf.mxu0
  %v113 = vadd.f32 0.0, %v112
  %v114 = vpop.f32.mrf.mxu0
  %v115 = vpop.f32.mrf.mxu0
  %v116 = vpop.f32.mrf.mxu0
  %117 = vdwg.mxu0
  %v118 = vadd.f32 %v12, %v113
  %119 = vst [vmem:[%s2] sm:$0x1] %v118
  // Predicated region
  $region10: #{afdf_forward.1} parent=0 // pred_check
    _
  $region11: #{afdf_forward.1} parent=0 // pred_check_branch
    %121 = sbr.rel (0) target = $region13
  $region12: #{afdf_forward.1} parent=0 // pred_region
    _
  $region13: #{afdf_forward.1} parent=0 // pred_fallthru
    _
  // Predicated region
  $region14: #{afdf_forward.1} parent=0 // pred_check
    _
  $region15: #{afdf_forward.1} parent=0 // pred_check_branch
    %123 = sbr.rel (0) target = $region17
  $region16: #{afdf_forward.1} parent=0 // pred_region
    _
  $region17: #{afdf_forward.1} parent=0 // pred_fallthru
    _

</llo_original>
